<compile_context>
chip_gen: v7x
topology: tpu7x:2x2x1
jax: 0.10.0
libtpu: 0.0.40
codegen_flags: <defaults>
</compile_context>

<pallas_src>
import functools

import jax
import jax.numpy as jnp
from jax.experimental import pallas as pl
from jax.experimental.pallas import tpu as pltpu


# ---------------------------------------------------------------------------
# Fused Pallas kernel: conv1 -> conv2 -> masked global-avg-pool -> folded head
# ---------------------------------------------------------------------------

def _ac_disc_kernel(x_ref, w1_ref, b1_ref, w2_ref, b2_ref, hw_ref, hb_ref,
                    mask_ref, out_ref, h1pad_ref, *, H, W):
    """One grid step processes a block of B images.

    x_ref    : (B, Cin, Lpad)  zero-padded images, flattened row-major, f32
    w1_ref   : (C1, 9*Cin)     conv1 taps (bf16)    b1_ref : (C1, 1) f32
    w2_ref   : (C2, 9*C1)      conv2 taps (bf16)    b2_ref : (C2, 1) f32
    hw_ref   : (n_out, C2)     folded fc@[real|obj] head, 1/(H*W) pre-folded
    hb_ref   : (n_out, 1)      folded head bias
    mask_ref : (1, L_out)      1.0 at real pixels, 0.0 at wrap-around junk cols
    out_ref  : (B, n_out, 1)   scores for this block
    h1pad_ref: (C1, Lpad)      VMEM scratch: zero-padded conv2 input (flat)
    """
    Wp = W + 2
    L_out = H * Wp                       # flat conv-output length (junk cols incl.)
    shift = Wp + 1                       # flat offset of pixel (0,0) in a padded image
    offs = [kh * Wp + kw for kh in range(3) for kw in range(3)]   # 9 tap offsets
    B = x_ref.shape[0]
    C1 = w1_ref.shape[0]
    Lpad = h1pad_ref.shape[1]

    # Zero only the halo bands of the pad scratch, once per grid step.  The
    # interior [shift, shift+L_out) is fully overwritten for every image.  We
    # deliberately do NOT gate this on program_id==0: with "parallel" semantics
    # each TensorCore owns its own scratch and only one core runs step 0.
    h1pad_ref[:, :shift] = jnp.zeros((C1, shift), jnp.float32)
    h1pad_ref[:, shift + L_out:] = jnp.zeros((C1, Lpad - shift - L_out), jnp.float32)

    mask = mask_ref[...]                 # (1, L_out)
    w1 = w1_ref[...]
    b1 = b1_ref[...]
    w2 = w2_ref[...]
    b2 = b2_ref[...]
    hw = hw_ref[...]
    hb = hb_ref[...]

    for b in range(B):                   # static unroll over the images of this block
        # ---- conv1: im2col = 9 contiguous lane-shifted slices of the padded
        # flat image -> ONE MXU matmul (K = 9*Cin), lane-dense (C, L_out) output.
        p1 = jnp.concatenate([x_ref[b, :, o:o + L_out] for o in offs], axis=0)
        h1 = jnp.dot(w1, p1.astype(jnp.bfloat16),
                     preferred_element_type=jnp.float32) + b1
        h1 = jnp.maximum(h1, 0.0)

        # Re-pad for conv2: masked junk columns land exactly on halo positions,
        # so one shifted store rebuilds the zero-padded feature map.
        h1pad_ref[:, shift:shift + L_out] = h1 * mask

        # ---- conv2: same single-matmul im2col, K = 9*C1.
        p2 = jnp.concatenate([h1pad_ref[:, o:o + L_out] for o in offs], axis=0)
        h2 = jnp.dot(w2, p2.astype(jnp.bfloat16),
                     preferred_element_type=jnp.float32) + b2
        h2 = jnp.maximum(h2, 0.0)

        # ---- GlobalAvgPool: masked lane reduction (1/(H*W) folded into hw).
        pooled = jnp.sum(h2 * mask, axis=1, keepdims=True)          # (C2, 1)

        # ---- Linear(D,1024) -> [real | obj] classifiers, folded into one tiny
        # (n_out, C2) matmul in the wrapper.
        out_ref[b] = (jnp.dot(hw, pooled, preferred_element_type=jnp.float32)
                      + hb).astype(out_ref.dtype)                   # (n_out, 1)


# ---------------------------------------------------------------------------
# Wrapper: padding / flattening / weight folding (layout plumbing only)
# ---------------------------------------------------------------------------

def ac_discriminator_forward(params, x, imgs_per_step=None):
    """x: (N, C, H, W) float32 (PyTorch NCHW) or (N, H, W).

    Returns (real_scores (N,1), obj_scores (N,num_objects), None), matching
    AcDiscriminator.forward with reconstruct_feature=False.
    """
    if x.ndim == 3:
        x = x[:, None]                                    # x = x[:, None]
    x = x.astype(jnp.float32)
    N, Cin, H, W = x.shape
    Wp = W + 2
    Lp_img = (H + 2) * Wp                                 # flat length of one padded image
    L_out = H * Wp                                        # flat conv-output length
    Lpad = pl.cdiv(Lp_img + 2, 128) * 128                 # lane-aligned per-image buffer

    # ---- conv / fc weights.  NOTE: layouts match the synthetic init below
    # (HWIO convs, (in,out) linears).  Real PyTorch checkpoints are OIHW and
    # nn.Linear is (out,in) and would need transposes here.
    C1 = params['conv1_w'].shape[-1]
    C2 = params['conv2_w'].shape[-1]
    w1 = params['conv1_w'].reshape(9 * Cin, C1).T.astype(jnp.bfloat16)    # (C1, 9*Cin)
    w2 = params['conv2_w'].reshape(9 * C1, C2).T.astype(jnp.bfloat16)     # (C2, 9*C1)
    b1 = params['conv1_b'].reshape(C1, 1).astype(jnp.float32)
    b2 = params['conv2_b'].reshape(C2, 1).astype(jnp.float32)

    # ---- fold Linear(D,1024) + real/obj classifiers into one (C2, n_out) matmul:
    # scores = pool @ (fc_w @ head_w) + (fc_b @ head_w + head_b)
    head_w = jnp.concatenate([params['real_w'], params['obj_w']], axis=1)  # (hidden, n_out)
    head_b = jnp.concatenate([params['real_b'], params['obj_b']])          # (n_out,)
    folded_w = params['fc_w'] @ head_w                                     # (C2, n_out)
    folded_b = params['fc_b'] @ head_w + head_b
    n_out = head_w.shape[1]                                                # 1 + num_objects
    hw_t = (folded_w / float(H * W)).T.astype(jnp.float32)                 # (n_out, C2)
    hb_t = folded_b.reshape(n_out, 1).astype(jnp.float32)                  # (n_out, 1)

    # ---- input: zero-pad ONCE here and flatten each padded image to a
    # lane-aligned row so the kernel's 9 im2col taps are contiguous slices.
    xp = jnp.pad(x, ((0, 0), (0, 0), (1, 1), (1, 1)))                      # (N,Cin,H+2,W+2)
    xflat = jnp.pad(xp.reshape(N, Cin, Lp_img),
                    ((0, 0), (0, 0), (0, Lpad - Lp_img)))                  # (N,Cin,Lpad)

    # validity mask over the flat conv output (wrap-around junk cols j in {W, W+1})
    mask = (jnp.arange(L_out) % Wp < W).astype(jnp.float32).reshape(1, L_out)

    # ---- batch blocking: B images per grid step (keep >=2 steps when N>1 so
    # v7x's two TensorCores both get work; cap the static unroll at 8).
    if imgs_per_step is None:
        imgs_per_step = min(8, max(1, pl.cdiv(N, 2)))
    B = int(imgs_per_step)
    steps = pl.cdiv(N, B)
    Np = steps * B
    if Np != N:
        xflat = jnp.pad(xflat, ((0, Np - N), (0, 0), (0, 0)))

    flops = Np * (2 * L_out * 9 * Cin * C1 + 2 * L_out * 9 * C1 * C2
                  + 2 * C2 * n_out)
    bytes_accessed = 4 * (xflat.size + b1.size + b2.size + hw_t.size + hb_t.size
                          + mask.size + Np * n_out) + 2 * (w1.size + w2.size)

    kernel = functools.partial(_ac_disc_kernel, H=H, W=W)
    out = pl.pallas_call(
        kernel,
        out_shape=jax.ShapeDtypeStruct((Np, n_out, 1), jnp.float32),
        grid=(steps,),
        in_specs=[
            pl.BlockSpec((B, Cin, Lpad), lambda g: (g, 0, 0)),
            pl.BlockSpec((C1, 9 * Cin), lambda g: (0, 0)),
            pl.BlockSpec((C1, 1), lambda g: (0, 0)),
            pl.BlockSpec((C2, 9 * C1), lambda g: (0, 0)),
            pl.BlockSpec((C2, 1), lambda g: (0, 0)),
            pl.BlockSpec((n_out, C2), lambda g: (0, 0)),
            pl.BlockSpec((n_out, 1), lambda g: (0, 0)),
            pl.BlockSpec((1, L_out), lambda g: (0, 0)),
        ],
        out_specs=pl.BlockSpec((B, n_out, 1), lambda g: (g, 0, 0)),
        scratch_shapes=[pltpu.VMEM((C1, Lpad), jnp.float32)],
        compiler_params=pltpu.CompilerParams(
            dimension_semantics=("parallel",)),
        cost_estimate=pl.CostEstimate(flops=flops, transcendentals=0,
                                      bytes_accessed=bytes_accessed),
    )(xflat, w1, b1, w2, b2, hw_t, hb_t, mask)

    scores = out.reshape(Np, n_out)[:N]
    real_scores = scores[:, :1]
    obj_scores = scores[:, 1:]
    # TODO(synk): reconstruct_feature=True branch (rec_feature Linear(D,4096))
    # is not implemented; this matches the args.d_obj_rec_feat_weight <= 0 path.
    return real_scores, obj_scores, None


# ---------------------------------------------------------------------------
# Parameters (deterministic synthetic init for the build_cnn stand-in)
# ---------------------------------------------------------------------------

def init_params(key, *, c_in=4, c1=8, c2=16, hidden=1024, num_objects=8):
    ks = jax.random.split(key, 10)
    rnd = lambda k, shape, s: jax.random.normal(k, shape, jnp.float32) * s
    return {
        # synthetic build_cnn arch: two 3x3 'same' conv + ReLU layers, D = c2
        'conv1_w': rnd(ks[0], (3, 3, c_in, c1), 0.1),
        'conv1_b': rnd(ks[1], (c1,), 0.01),
        'conv2_w': rnd(ks[2], (3, 3, c1, c2), 0.1),
        'conv2_b': rnd(ks[3], (c2,), 0.01),
        # nn.Linear(D, 1024)
        'fc_w': rnd(ks[4], (c2, hidden), 0.05),
        'fc_b': rnd(ks[5], (hidden,), 0.01),
        # real_classifier = nn.Linear(1024, 1)
        'real_w': rnd(ks[6], (hidden, 1), 0.05),
        'real_b': rnd(ks[7], (1,), 0.01),
        # obj_classifier = nn.Linear(1024, num_objects)
        'obj_w': rnd(ks[8], (hidden, num_objects), 0.05),
        'obj_b': rnd(ks[9], (num_objects,), 0.01),
    }


# ---------------------------------------------------------------------------

if __name__ == "__main__":
    # vocab: 1 + num_objects names -> num_objects = 8 (matches __init__ logic)
    vocab = {'object_idx_to_name': ['__image__'] + [f'obj{i}' for i in range(8)]}
    num_objects = len(vocab['object_idx_to_name']) - 1

    key = jax.random.PRNGKey(0)
    k_param, k_x = jax.random.split(key)
    params = init_params(k_param, c_in=4, num_objects=num_objects)

    # small object crops: batch=2, channels=4, spatial=16x16 (NCHW like PyTorch)
    x = jax.random.normal(k_x, (2, 4, 16, 16), jnp.float32)

    fwd = jax.jit(ac_discriminator_forward)
    real_scores, obj_scores, rec = fwd(params, x)
    jax.block_until_ready((real_scores, obj_scores))

    assert real_scores.shape == (2, 1)
    assert obj_scores.shape == (2, num_objects)
    assert rec is None
    print("KERNEL_OK")
</pallas_src>

<mosaic_0001>
module attributes {stable_mosaic.version = 11 : i64} {
  func.func @_ac_disc_kernel(%arg0: i32, %arg1: memref<1x4x384xf32, #tpu.memory_space<vmem>>, %arg2: memref<8x36xbf16, #tpu.memory_space<vmem>>, %arg3: memref<8x1xf32, #tpu.memory_space<vmem>>, %arg4: memref<16x72xbf16, #tpu.memory_space<vmem>>, %arg5: memref<16x1xf32, #tpu.memory_space<vmem>>, %arg6: memref<9x16xf32, #tpu.memory_space<vmem>>, %arg7: memref<9x1xf32, #tpu.memory_space<vmem>>, %arg8: memref<1x288xf32, #tpu.memory_space<vmem>>, %arg9: memref<1x9x1xf32, #tpu.memory_space<vmem>>, %arg10: memref<8x384xf32, #tpu.memory_space<vmem>>) attributes {dimension_semantics = [#tpu.dimension_semantics<parallel>], iteration_bounds = array<i64: 2>, scalar_prefetch = 0 : i64, scratch_operands = 1 : i64, tpu.core_type = #tpu.core_type<tc>, window_params = [{transform_indices = @transform_0, window_bounds = array<i64: 1, 4, 384>}, {pipeline_mode = #tpu.pipeline_mode<synchronous>, transform_indices = @transform_1, window_bounds = array<i64: 8, 36>}, {pipeline_mode = #tpu.pipeline_mode<synchronous>, transform_indices = @transform_2, window_bounds = array<i64: 8, 1>}, {pipeline_mode = #tpu.pipeline_mode<synchronous>, transform_indices = @transform_3, window_bounds = array<i64: 16, 72>}, {pipeline_mode = #tpu.pipeline_mode<synchronous>, transform_indices = @transform_4, window_bounds = array<i64: 16, 1>}, {pipeline_mode = #tpu.pipeline_mode<synchronous>, transform_indices = @transform_5, window_bounds = array<i64: 9, 16>}, {pipeline_mode = #tpu.pipeline_mode<synchronous>, transform_indices = @transform_6, window_bounds = array<i64: 9, 1>}, {pipeline_mode = #tpu.pipeline_mode<synchronous>, transform_indices = @transform_7, window_bounds = array<i64: 1, 288>}, {transform_indices = @transform_8, window_bounds = array<i64: 1, 9, 1>}]} {
    %cst = arith.constant 0.000000e+00 : f32
    %0 = vector.broadcast %cst : f32 to vector<8x19xf32>
    %c0 = arith.constant 0 : index
    %c0_0 = arith.constant 0 : index
    %1 = vector.load %arg10[%c0, %c0_0] : memref<8x384xf32, #tpu.memory_space<vmem>>, vector<8x19xf32>
    tpu.vector_store %arg10[%c0, %c0_0], %0 {strides = array<i32>} : memref<8x384xf32, #tpu.memory_space<vmem>>, vector<8x19xf32>,
    %cst_1 = arith.constant 0.000000e+00 : f32
    %2 = vector.broadcast %cst_1 : f32 to vector<8x77xf32>
    %c0_2 = arith.constant 0 : index
    %c307 = arith.constant 307 : index
    %3 = vector.load %arg10[%c0_2, %c307] : memref<8x384xf32, #tpu.memory_space<vmem>>, vector<8x77xf32>
    tpu.vector_store %arg10[%c0_2, %c307], %2 {strides = array<i32>} : memref<8x384xf32, #tpu.memory_space<vmem>>, vector<8x77xf32>,
    %c0_3 = arith.constant 0 : index
    %c0_4 = arith.constant 0 : index
    %4 = vector.load %arg8[%c0_3, %c0_4] : memref<1x288xf32, #tpu.memory_space<vmem>>, vector<1x288xf32>
    %c0_5 = arith.constant 0 : index
    %c0_6 = arith.constant 0 : index
    %5 = vector.load %arg2[%c0_5, %c0_6] : memref<8x36xbf16, #tpu.memory_space<vmem>>, vector<8x36xbf16>
    %c0_7 = arith.constant 0 : index
    %c0_8 = arith.constant 0 : index
    %6 = vector.load %arg3[%c0_7, %c0_8] : memref<8x1xf32, #tpu.memory_space<vmem>>, vector<8x1xf32>
    %c0_9 = arith.constant 0 : index
    %c0_10 = arith.constant 0 : index
    %7 = vector.load %arg4[%c0_9, %c0_10] : memref<16x72xbf16, #tpu.memory_space<vmem>>, vector<16x72xbf16>
    %c0_11 = arith.constant 0 : index
    %c0_12 = arith.constant 0 : index
    %8 = vector.load %arg5[%c0_11, %c0_12] : memref<16x1xf32, #tpu.memory_space<vmem>>, vector<16x1xf32>
    %c0_13 = arith.constant 0 : index
    %c0_14 = arith.constant 0 : index
    %9 = vector.load %arg6[%c0_13, %c0_14] : memref<9x16xf32, #tpu.memory_space<vmem>>, vector<9x16xf32>
    %c0_15 = arith.constant 0 : index
    %c0_16 = arith.constant 0 : index
    %10 = vector.load %arg7[%c0_15, %c0_16] : memref<9x1xf32, #tpu.memory_space<vmem>>, vector<9x1xf32>
    %c0_17 = arith.constant 0 : index
    %c0_18 = arith.constant 0 : index
    %c0_19 = arith.constant 0 : index
    %11 = vector.load %arg1[%c0_17, %c0_18, %c0_19] : memref<1x4x384xf32, #tpu.memory_space<vmem>>, vector<1x4x288xf32>
    %12 = vector.shape_cast %11 : vector<1x4x288xf32> to vector<4x288xf32>
    %c0_20 = arith.constant 0 : index
    %c0_21 = arith.constant 0 : index
    %c1 = arith.constant 1 : index
    %13 = vector.load %arg1[%c0_20, %c0_21, %c1] : memref<1x4x384xf32, #tpu.memory_space<vmem>>, vector<1x4x288xf32>
    %14 = vector.shape_cast %13 : vector<1x4x288xf32> to vector<4x288xf32>
    %c0_22 = arith.constant 0 : index
    %c0_23 = arith.constant 0 : index
    %c2 = arith.constant 2 : index
    %15 = vector.load %arg1[%c0_22, %c0_23, %c2] : memref<1x4x384xf32, #tpu.memory_space<vmem>>, vector<1x4x288xf32>
    %16 = vector.shape_cast %15 : vector<1x4x288xf32> to vector<4x288xf32>
    %c0_24 = arith.constant 0 : index
    %c0_25 = arith.constant 0 : index
    %c18 = arith.constant 18 : index
    %17 = vector.load %arg1[%c0_24, %c0_25, %c18] : memref<1x4x384xf32, #tpu.memory_space<vmem>>, vector<1x4x288xf32>
    %18 = vector.shape_cast %17 : vector<1x4x288xf32> to vector<4x288xf32>
    %c0_26 = arith.constant 0 : index
    %c0_27 = arith.constant 0 : index
    %c19 = arith.constant 19 : index
    %19 = vector.load %arg1[%c0_26, %c0_27, %c19] : memref<1x4x384xf32, #tpu.memory_space<vmem>>, vector<1x4x288xf32>
    %20 = vector.shape_cast %19 : vector<1x4x288xf32> to vector<4x288xf32>
    %c0_28 = arith.constant 0 : index
    %c0_29 = arith.constant 0 : index
    %c20 = arith.constant 20 : index
    %21 = vector.load %arg1[%c0_28, %c0_29, %c20] : memref<1x4x384xf32, #tpu.memory_space<vmem>>, vector<1x4x288xf32>
    %22 = vector.shape_cast %21 : vector<1x4x288xf32> to vector<4x288xf32>
    %c0_30 = arith.constant 0 : index
    %c0_31 = arith.constant 0 : index
    %c36 = arith.constant 36 : index
    %23 = vector.load %arg1[%c0_30, %c0_31, %c36] : memref<1x4x384xf32, #tpu.memory_space<vmem>>, vector<1x4x288xf32>
    %24 = vector.shape_cast %23 : vector<1x4x288xf32> to vector<4x288xf32>
    %c0_32 = arith.constant 0 : index
    %c0_33 = arith.constant 0 : index
    %c37 = arith.constant 37 : index
    %25 = vector.load %arg1[%c0_32, %c0_33, %c37] : memref<1x4x384xf32, #tpu.memory_space<vmem>>, vector<1x4x288xf32>
    %26 = vector.shape_cast %25 : vector<1x4x288xf32> to vector<4x288xf32>
    %c0_34 = arith.constant 0 : index
    %c0_35 = arith.constant 0 : index
    %c38 = arith.constant 38 : index
    %27 = vector.load %arg1[%c0_34, %c0_35, %c38] : memref<1x4x384xf32, #tpu.memory_space<vmem>>, vector<1x4x288xf32>
    %28 = vector.shape_cast %27 : vector<1x4x288xf32> to vector<4x288xf32>
    %29 = tpu.concatenate %12, %14, %16, %18, %20, %22, %24, %26, %28 in 0 : vector<4x288xf32>, vector<4x288xf32>, vector<4x288xf32>, vector<4x288xf32>, vector<4x288xf32>, vector<4x288xf32>, vector<4x288xf32>, vector<4x288xf32>, vector<4x288xf32> -> vector<36x288xf32>
    %30 = arith.truncf %29 : vector<36x288xf32> to vector<36x288xbf16>
    %cst_36 = arith.constant dense<0.000000e+00> : vector<8x288xf32>
    %31 = tpu.matmul %5, %30, %cst_36 {dimension_numbers = #tpu.dot_dimension_numbers<[1], [0], [0], [1], [0, 0, 1, 1], [], []>} : vector<8x36xbf16>, vector<36x288xbf16>, vector<8x288xf32> -> vector<8x288xf32>
    %32 = vector.broadcast %6 : vector<8x1xf32> to vector<8x288xf32>
    %33 = arith.addf %31, %32 : vector<8x288xf32>
    %cst_37 = arith.constant 0.000000e+00 : f32
    %34 = vector.broadcast %cst_37 : f32 to vector<8x288xf32>
    %35 = arith.maximumf %33, %34 : vector<8x288xf32>
    %36 = vector.broadcast %4 : vector<1x288xf32> to vector<8x288xf32>
    %37 = arith.mulf %35, %36 : vector<8x288xf32>
    %c0_38 = arith.constant 0 : index
    %c19_39 = arith.constant 19 : index
    %38 = vector.load %arg10[%c0_38, %c19_39] : memref<8x384xf32, #tpu.memory_space<vmem>>, vector<8x288xf32>
    tpu.vector_store %arg10[%c0_38, %c19_39], %37 {strides = array<i32>} : memref<8x384xf32, #tpu.memory_space<vmem>>, vector<8x288xf32>,
    %c0_40 = arith.constant 0 : index
    %c0_41 = arith.constant 0 : index
    %39 = vector.load %arg10[%c0_40, %c0_41] : memref<8x384xf32, #tpu.memory_space<vmem>>, vector<8x288xf32>
    %c0_42 = arith.constant 0 : index
    %c1_43 = arith.constant 1 : index
    %40 = vector.load %arg10[%c0_42, %c1_43] : memref<8x384xf32, #tpu.memory_space<vmem>>, vector<8x288xf32>
    %c0_44 = arith.constant 0 : index
    %c2_45 = arith.constant 2 : index
    %41 = vector.load %arg10[%c0_44, %c2_45] : memref<8x384xf32, #tpu.memory_space<vmem>>, vector<8x288xf32>
    %c0_46 = arith.constant 0 : index
    %c18_47 = arith.constant 18 : index
    %42 = vector.load %arg10[%c0_46, %c18_47] : memref<8x384xf32, #tpu.memory_space<vmem>>, vector<8x288xf32>
    %c0_48 = arith.constant 0 : index
    %c19_49 = arith.constant 19 : index
    %43 = vector.load %arg10[%c0_48, %c19_49] : memref<8x384xf32, #tpu.memory_space<vmem>>, vector<8x288xf32>
    %c0_50 = arith.constant 0 : index
    %c20_51 = arith.constant 20 : index
    %44 = vector.load %arg10[%c0_50, %c20_51] : memref<8x384xf32, #tpu.memory_space<vmem>>, vector<8x288xf32>
    %c0_52 = arith.constant 0 : index
    %c36_53 = arith.constant 36 : index
    %45 = vector.load %arg10[%c0_52, %c36_53] : memref<8x384xf32, #tpu.memory_space<vmem>>, vector<8x288xf32>
    %c0_54 = arith.constant 0 : index
    %c37_55 = arith.constant 37 : index
    %46 = vector.load %arg10[%c0_54, %c37_55] : memref<8x384xf32, #tpu.memory_space<vmem>>, vector<8x288xf32>
    %c0_56 = arith.constant 0 : index
    %c38_57 = arith.constant 38 : index
    %47 = vector.load %arg10[%c0_56, %c38_57] : memref<8x384xf32, #tpu.memory_space<vmem>>, vector<8x288xf32>
    %48 = tpu.concatenate %39, %40, %41, %42, %43, %44, %45, %46, %47 in 0 : vector<8x288xf32>, vector<8x288xf32>, vector<8x288xf32>, vector<8x288xf32>, vector<8x288xf32>, vector<8x288xf32>, vector<8x288xf32>, vector<8x288xf32>, vector<8x288xf32> -> vector<72x288xf32>
    %49 = arith.truncf %48 : vector<72x288xf32> to vector<72x288xbf16>
    %cst_58 = arith.constant dense<0.000000e+00> : vector<16x288xf32>
    %50 = tpu.matmul %7, %49, %cst_58 {dimension_numbers = #tpu.dot_dimension_numbers<[1], [0], [0], [1], [0, 0, 1, 1], [], []>} : vector<16x72xbf16>, vector<72x288xbf16>, vector<16x288xf32> -> vector<16x288xf32>
    %51 = vector.broadcast %8 : vector<16x1xf32> to vector<16x288xf32>
    %52 = arith.addf %50, %51 : vector<16x288xf32>
    %cst_59 = arith.constant 0.000000e+00 : f32
    %53 = vector.broadcast %cst_59 : f32 to vector<16x288xf32>
    %54 = arith.maximumf %52, %53 : vector<16x288xf32>
    %55 = vector.broadcast %4 : vector<1x288xf32> to vector<16x288xf32>
    %56 = arith.mulf %54, %55 : vector<16x288xf32>
    %cst_60 = arith.constant dense<0.000000e+00> : vector<16xf32>
    %57 = vector.multi_reduction <add>, %56, %cst_60 [1] : vector<16x288xf32> to vector<16xf32>
    %58 = vector.shape_cast %57 : vector<16xf32> to vector<16x1xf32>
    %cst_61 = arith.constant dense<0.000000e+00> : vector<9x1xf32>
    %59 = tpu.matmul %9, %58, %cst_61 {dimension_numbers = #tpu.dot_dimension_numbers<[1], [0], [0], [1], [0, 0, 1, 1], [], []>} : vector<9x16xf32>, vector<16x1xf32>, vector<9x1xf32> -> vector<9x1xf32>
    %60 = arith.addf %59, %10 : vector<9x1xf32>
    %c0_62 = arith.constant 0 : index
    %c0_63 = arith.constant 0 : index
    %c0_64 = arith.constant 0 : index
    %61 = vector.load %arg9[%c0_62, %c0_63, %c0_64] : memref<1x9x1xf32, #tpu.memory_space<vmem>>, vector<1x9x1xf32>
    %62 = vector.shape_cast %61 : vector<1x9x1xf32> to vector<9x1xf32>
    %63 = vector.shape_cast %60 : vector<9x1xf32> to vector<1x9x1xf32>
    tpu.vector_store %arg9[%c0_62, %c0_63, %c0_64], %63 {strides = array<i32>} : memref<1x9x1xf32, #tpu.memory_space<vmem>>, vector<1x9x1xf32>,
    return
  }
  func.func @transform_0(%arg0: i32) -> (i32, i32, i32) {
    %c0_i32 = arith.constant 0 : i32
    %c0_i32_0 = arith.constant 0 : i32
    %c0_i32_1 = arith.constant 0 : i32
    return %arg0, %c0_i32, %c0_i32_0 : i32, i32, i32
  }
  func.func @transform_1(%arg0: i32) -> (i32, i32) {
    %c0_i32 = arith.constant 0 : i32
    %c0_i32_0 = arith.constant 0 : i32
    %c0_i32_1 = arith.constant 0 : i32
    return %c0_i32, %c0_i32_0 : i32, i32
  }
  func.func @transform_2(%arg0: i32) -> (i32, i32) {
    %c0_i32 = arith.constant 0 : i32
    %c0_i32_0 = arith.constant 0 : i32
    %c0_i32_1 = arith.constant 0 : i32
    return %c0_i32, %c0_i32_0 : i32, i32
  }
  func.func @transform_3(%arg0: i32) -> (i32, i32) {
    %c0_i32 = arith.constant 0 : i32
    %c0_i32_0 = arith.constant 0 : i32
    %c0_i32_1 = arith.constant 0 : i32
    return %c0_i32, %c0_i32_0 : i32, i32
  }
  func.func @transform_4(%arg0: i32) -> (i32, i32) {
    %c0_i32 = arith.constant 0 : i32
    %c0_i32_0 = arith.constant 0 : i32
    %c0_i32_1 = arith.constant 0 : i32
    return %c0_i32, %c0_i32_0 : i32, i32
  }
  func.func @transform_5(%arg0: i32) -> (i32, i32) {
    %c0_i32 = arith.constant 0 : i32
    %c0_i32_0 = arith.constant 0 : i32
    %c0_i32_1 = arith.constant 0 : i32
    return %c0_i32, %c0_i32_0 : i32, i32
  }
  func.func @transform_6(%arg0: i32) -> (i32, i32) {
    %c0_i32 = arith.constant 0 : i32
    %c0_i32_0 = arith.constant 0 : i32
    %c0_i32_1 = arith.constant 0 : i32
    return %c0_i32, %c0_i32_0 : i32, i32
  }
  func.func @transform_7(%arg0: i32) -> (i32, i32) {
    %c0_i32 = arith.constant 0 : i32
    %c0_i32_0 = arith.constant 0 : i32
    %c0_i32_1 = arith.constant 0 : i32
    return %c0_i32, %c0_i32_0 : i32, i32
  }
  func.func @transform_8(%arg0: i32) -> (i32, i32, i32) {
    %c0_i32 = arith.constant 0 : i32
    %c0_i32_0 = arith.constant 0 : i32
    %c0_i32_1 = arith.constant 0 : i32
    return %arg0, %c0_i32, %c0_i32_0 : i32, i32, i32
  }
}

</mosaic_0001>

<llo_original>
// kernel: ac_discriminator_forward.1
$region0: #{ac_discriminator_forward.1}
  #allocation0 [shape = 'u32[]', space=smem, size = 0x4, offset = 0x4, fixed_abs, tag = 'smem constant byte address 0x4 - core index']
  #allocation1 [shape = 'u32[144,128]{1,0:T(1,128)}', space=vmem, size = 0x12000, scoped, tag = 'internal scratch']
  #allocation2 [shape = 'f32[8,384]{1,0:T(8,128)}', space=vmem, size = 0x3000, scoped, tag = 'scratch operand']
  %s0 = inlined_call_operand.vmem [shape: f32[2,4,384], index: 0, kind: input, shape index: {}]
  %s1 = inlined_call_operand.vmem [shape: bf16[8,36], index: 1, kind: input, shape index: {}]
  %s2 = inlined_call_operand.vmem [shape: f32[8,1], index: 2, kind: input, shape index: {}]
  %s3 = inlined_call_operand.vmem [shape: bf16[16,72], index: 3, kind: input, shape index: {}]
  %s4 = inlined_call_operand.vmem [shape: f32[16,1], index: 4, kind: input, shape index: {}]
  %s5 = inlined_call_operand.vmem [shape: f32[9,16], index: 5, kind: input, shape index: {}]
  %s6 = inlined_call_operand.vmem [shape: f32[9,1], index: 6, kind: input, shape index: {}]
  %s7 = inlined_call_operand.vmem [shape: f32[1,288], index: 7, kind: input, shape index: {}]
  %s8 = inlined_call_operand.vmem [shape: f32[2,9,1], index: 8, kind: output, shape index: {}]
  %s9 = sld [smem:[#allocation0]]
  $region65: #{ac_discriminator_forward.1} parent=0
    _
  %s11 = ssub.s32 1, %s9
  %s12 = scalar_select 0, %s11, %s9
  loop: start=0, step=1, limit=4
  $region2: #{ac_discriminator_forward.1} parent=0 // loop_pre_header
    _
  $region3: #{ac_discriminator_forward.1} parent=0 // loop_header
    %s14 = sphi 0, %s18
    %p15 = scmp.ge.s32.totalorder %s14, 4
    %s24 = sphi 0, %s26
    %s27 = sphi 0, %s24
    %s28 = sphi 0, %s27
    %s44 = sphi 0, %s28
    %s48 = sphi 0, %s48
    %s50 = sphi 0, %s48
    %s51 = sphi 0, %s50
    %s65 = sphi 0, %s51
    %s69 = sphi 0, %s69
    %s71 = sphi 0, %s69
    %s72 = sphi 0, %s71
    %s86 = sphi 0, %s72
    %s90 = sphi 0, %s90
    %s92 = sphi 0, %s90
    %s93 = sphi 0, %s92
    %s107 = sphi 0, %s93
    %s111 = sphi 0, %s111
    %s113 = sphi 0, %s111
    %s114 = sphi 0, %s113
    %s128 = sphi 0, %s114
    %s132 = sphi 0, %s132
    %s134 = sphi 0, %s132
    %s135 = sphi 0, %s134
    %s149 = sphi 0, %s135
    %s153 = sphi 0, %s153
    %s155 = sphi 0, %s153
    %s156 = sphi 0, %s155
    %s170 = sphi 0, %s156
    %s174 = sphi 0, %s174
    %s176 = sphi 0, %s174
    %s177 = sphi 0, %s176
    %s191 = sphi 0, %s177
    %s197 = sphi 0, %s199
    %s200 = sphi 0, %s197
    %s201 = sphi 0, %s200
    %s217 = sphi 0, %s201
  $region4: #{ac_discriminator_forward.1} parent=0 // loop_header_branch
    %17 = sbr.rel (%p15) target = $region8
  $region5: #{ac_discriminator_forward.1} parent=0 // loop_body
    %s19 = ssub.s32 %s14, 1
    %s20 = ssub.s32 %s14, 2
    %s21 = sadd.s32 %s14, 1
    %s22 = ssub.s32 %s14, %s21
    %p23 = scmp.eq.s32.totalorder %s22, 0
    %s25 = sadd.s32 %s24, 1
    %s26 = scalar_select %p23, %s24, %s25
    %p29 = pneg %p23
    %p30 = scmp.eq.s32.totalorder %s14, 1
    %p31 = por %p29, %p30
    %p32 = scmp.ne.s32.totalorder %s24, %s27
    %p33 = scmp.eq.s32.totalorder %s14, 0
    %p34 = por %p32, %p33
    %p35 = scmp.ne.s32.totalorder %s24, %s27
    %p36 = scmp.eq.s32.totalorder %s19, 1
    %p37 = por %p35, %p36
    %p38 = scmp.ne.s32.totalorder %s27, %s28
    %p39 = scmp.eq.s32.totalorder %s19, 0
    %p40 = por %p38, %p39
    %p41 = scmp.ne.s32.totalorder %s27, %s28
    %p42 = scmp.eq.s32.totalorder %s20, 1
    %p43 = por %p41, %p42
    %p45 = scmp.ne.s32.totalorder %s28, %s44
    %p46 = scmp.eq.s32.totalorder %s20, 0
    %p47 = por %p45, %p46
    %s49 = sadd.s32 %s48, 1
    %p52 = scmp.eq.s32.totalorder %s14, 1
    %p53 = scmp.ne.s32.totalorder %s48, %s50
    %p54 = scmp.eq.s32.totalorder %s14, 0
    %p55 = por %p53, %p54
    %p56 = scmp.ne.s32.totalorder %s48, %s50
    %p57 = scmp.eq.s32.totalorder %s19, 1
    %p58 = por %p56, %p57
    %p59 = scmp.ne.s32.totalorder %s50, %s51
    %p60 = scmp.eq.s32.totalorder %s19, 0
    %p61 = por %p59, %p60
    %p62 = scmp.ne.s32.totalorder %s50, %s51
    %p63 = scmp.eq.s32.totalorder %s20, 1
    %p64 = por %p62, %p63
    %p66 = scmp.ne.s32.totalorder %s51, %s65
    %p67 = scmp.eq.s32.totalorder %s20, 0
    %p68 = por %p66, %p67
    %s70 = sadd.s32 %s69, 1
    %p73 = scmp.eq.s32.totalorder %s14, 1
    %p74 = scmp.ne.s32.totalorder %s69, %s71
    %p75 = scmp.eq.s32.totalorder %s14, 0
    %p76 = por %p74, %p75
    %p77 = scmp.ne.s32.totalorder %s69, %s71
    %p78 = scmp.eq.s32.totalorder %s19, 1
    %p79 = por %p77, %p78
    %p80 = scmp.ne.s32.totalorder %s71, %s72
    %p81 = scmp.eq.s32.totalorder %s19, 0
    %p82 = por %p80, %p81
    %p83 = scmp.ne.s32.totalorder %s71, %s72
    %p84 = scmp.eq.s32.totalorder %s20, 1
    %p85 = por %p83, %p84
    %p87 = scmp.ne.s32.totalorder %s72, %s86
    %p88 = scmp.eq.s32.totalorder %s20, 0
    %p89 = por %p87, %p88
    %s91 = sadd.s32 %s90, 1
    %p94 = scmp.eq.s32.totalorder %s14, 1
    %p95 = scmp.ne.s32.totalorder %s90, %s92
    %p96 = scmp.eq.s32.totalorder %s14, 0
    %p97 = por %p95, %p96
    %p98 = scmp.ne.s32.totalorder %s90, %s92
    %p99 = scmp.eq.s32.totalorder %s19, 1
    %p100 = por %p98, %p99
    %p101 = scmp.ne.s32.totalorder %s92, %s93
    %p102 = scmp.eq.s32.totalorder %s19, 0
    %p103 = por %p101, %p102
    %p104 = scmp.ne.s32.totalorder %s92, %s93
    %p105 = scmp.eq.s32.totalorder %s20, 1
    %p106 = por %p104, %p105
    %p108 = scmp.ne.s32.totalorder %s93, %s107
    %p109 = scmp.eq.s32.totalorder %s20, 0
    %p110 = por %p108, %p109
    %s112 = sadd.s32 %s111, 1
    %p115 = scmp.eq.s32.totalorder %s14, 1
    %p116 = scmp.ne.s32.totalorder %s111, %s113
    %p117 = scmp.eq.s32.totalorder %s14, 0
    %p118 = por %p116, %p117
    %p119 = scmp.ne.s32.totalorder %s111, %s113
    %p120 = scmp.eq.s32.totalorder %s19, 1
    %p121 = por %p119, %p120
    %p122 = scmp.ne.s32.totalorder %s113, %s114
    %p123 = scmp.eq.s32.totalorder %s19, 0
    %p124 = por %p122, %p123
    %p125 = scmp.ne.s32.totalorder %s113, %s114
    %p126 = scmp.eq.s32.totalorder %s20, 1
    %p127 = por %p125, %p126
    %p129 = scmp.ne.s32.totalorder %s114, %s128
    %p130 = scmp.eq.s32.totalorder %s20, 0
    %p131 = por %p129, %p130
    %s133 = sadd.s32 %s132, 1
    %p136 = scmp.eq.s32.totalorder %s14, 1
    %p137 = scmp.ne.s32.totalorder %s132, %s134
    %p138 = scmp.eq.s32.totalorder %s14, 0
    %p139 = por %p137, %p138
    %p140 = scmp.ne.s32.totalorder %s132, %s134
    %p141 = scmp.eq.s32.totalorder %s19, 1
    %p142 = por %p140, %p141
    %p143 = scmp.ne.s32.totalorder %s134, %s135
    %p144 = scmp.eq.s32.totalorder %s19, 0
    %p145 = por %p143, %p144
    %p146 = scmp.ne.s32.totalorder %s134, %s135
    %p147 = scmp.eq.s32.totalorder %s20, 1
    %p148 = por %p146, %p147
    %p150 = scmp.ne.s32.totalorder %s135, %s149
    %p151 = scmp.eq.s32.totalorder %s20, 0
    %p152 = por %p150, %p151
    %s154 = sadd.s32 %s153, 1
    %p157 = scmp.eq.s32.totalorder %s14, 1
    %p158 = scmp.ne.s32.totalorder %s153, %s155
    %p159 = scmp.eq.s32.totalorder %s14, 0
    %p160 = por %p158, %p159
    %p161 = scmp.ne.s32.totalorder %s153, %s155
    %p162 = scmp.eq.s32.totalorder %s19, 1
    %p163 = por %p161, %p162
    %p164 = scmp.ne.s32.totalorder %s155, %s156
    %p165 = scmp.eq.s32.totalorder %s19, 0
    %p166 = por %p164, %p165
    %p167 = scmp.ne.s32.totalorder %s155, %s156
    %p168 = scmp.eq.s32.totalorder %s20, 1
    %p169 = por %p167, %p168
    %p171 = scmp.ne.s32.totalorder %s156, %s170
    %p172 = scmp.eq.s32.totalorder %s20, 0
    %p173 = por %p171, %p172
    %s175 = sadd.s32 %s174, 1
    %p178 = scmp.eq.s32.totalorder %s14, 1
    %p179 = scmp.ne.s32.totalorder %s174, %s176
    %p180 = scmp.eq.s32.totalorder %s14, 0
    %p181 = por %p179, %p180
    %p182 = scmp.ne.s32.totalorder %s174, %s176
    %p183 = scmp.eq.s32.totalorder %s19, 1
    %p184 = por %p182, %p183
    %p185 = scmp.ne.s32.totalorder %s176, %s177
    %p186 = scmp.eq.s32.totalorder %s19, 0
    %p187 = por %p185, %p186
    %p188 = scmp.ne.s32.totalorder %s176, %s177
    %p189 = scmp.eq.s32.totalorder %s20, 1
    %p190 = por %p188, %p189
    %p192 = scmp.ne.s32.totalorder %s177, %s191
    %p193 = scmp.eq.s32.totalorder %s20, 0
    %p194 = por %p192, %p193
    %s195 = ssub.s32 %s14, %s21
    %p196 = scmp.eq.s32.totalorder %s195, 0
    %s198 = sadd.s32 %s197, 1
    %s199 = scalar_select %p196, %s197, %s198
    %p202 = pneg %p196
    %p203 = scmp.eq.s32.totalorder %s14, 1
    %p204 = por %p202, %p203
    %p205 = scmp.ne.s32.totalorder %s197, %s200
    %p206 = scmp.eq.s32.totalorder %s14, 0
    %p207 = por %p205, %p206
    %p208 = scmp.ne.s32.totalorder %s197, %s200
    %p209 = scmp.eq.s32.totalorder %s19, 1
    %p210 = por %p208, %p209
    %p211 = scmp.ne.s32.totalorder %s200, %s201
    %p212 = scmp.eq.s32.totalorder %s19, 0
    %p213 = por %p211, %p212
    %p214 = scmp.ne.s32.totalorder %s200, %s201
    %p215 = scmp.eq.s32.totalorder %s20, 1
    %p216 = por %p214, %p215
    %p218 = scmp.ne.s32.totalorder %s201, %s217
    %p219 = scmp.eq.s32.totalorder %s20, 0
    %p220 = por %p218, %p219
    %p221 = scmp.le.s32.totalorder 1, %s14
    %p222 = scmp.lt.s32.totalorder %s14, 3
    %p223 = pnand %p221, %p222
    %p224 = pneg %p223
    // Predicated region
    $region9: #{ac_discriminator_forward.1} parent=5 // pred_check
      _
    $region10: #{ac_discriminator_forward.1} parent=5 // pred_check_branch
      %226 = sbr.rel (%p223) target = $region12
    $region11: #{ac_discriminator_forward.1} parent=5 // pred_region
      %s227 = ssub.s32 %s14, 1
      // Predicated region
      $region13: #{ac_discriminator_forward.1} parent=11 // pred_check
        %p228 = pneg %p61
      $region14: #{ac_discriminator_forward.1} parent=11 // pred_check_branch
        %230 = sbr.rel (%p228) target = $region16
      $region15: #{ac_discriminator_forward.1} parent=11 // pred_region
        _
      $region16: #{ac_discriminator_forward.1} parent=11 // pred_fallthru
        _
      // Predicated region
      $region17: #{ac_discriminator_forward.1} parent=11 // pred_check
        %p231 = pneg %p82
      $region18: #{ac_discriminator_forward.1} parent=11 // pred_check_branch
        %233 = sbr.rel (%p231) target = $region20
      $region19: #{ac_discriminator_forward.1} parent=11 // pred_region
        _
      $region20: #{ac_discriminator_forward.1} parent=11 // pred_fallthru
        _
      // Predicated region
      $region21: #{ac_discriminator_forward.1} parent=11 // pred_check
        %p234 = pneg %p103
      $region22: #{ac_discriminator_forward.1} parent=11 // pred_check_branch
        %236 = sbr.rel (%p234) target = $region24
      $region23: #{ac_discriminator_forward.1} parent=11 // pred_region
        _
      $region24: #{ac_discriminator_forward.1} parent=11 // pred_fallthru
        _
      // Predicated region
      $region25: #{ac_discriminator_forward.1} parent=11 // pred_check
        %p237 = pneg %p124
      $region26: #{ac_discriminator_forward.1} parent=11 // pred_check_branch
        %239 = sbr.rel (%p237) target = $region28
      $region27: #{ac_discriminator_forward.1} parent=11 // pred_region
        _
      $region28: #{ac_discriminator_forward.1} parent=11 // pred_fallthru
        _
      // Predicated region
      $region29: #{ac_discriminator_forward.1} parent=11 // pred_check
        %p240 = pneg %p145
      $region30: #{ac_discriminator_forward.1} parent=11 // pred_check_branch
        %242 = sbr.rel (%p240) target = $region32
      $region31: #{ac_discriminator_forward.1} parent=11 // pred_region
        _
      $region32: #{ac_discriminator_forward.1} parent=11 // pred_fallthru
        _
      // Predicated region
      $region33: #{ac_discriminator_forward.1} parent=11 // pred_check
        %p243 = pneg %p166
      $region34: #{ac_discriminator_forward.1} parent=11 // pred_check_branch
        %245 = sbr.rel (%p243) target = $region36
      $region35: #{ac_discriminator_forward.1} parent=11 // pred_region
        _
      $region36: #{ac_discriminator_forward.1} parent=11 // pred_fallthru
        _
      // Predicated region
      $region37: #{ac_discriminator_forward.1} parent=11 // pred_check
        %p246 = pneg %p187
      $region38: #{ac_discriminator_forward.1} parent=11 // pred_check_branch
        %248 = sbr.rel (%p246) target = $region40
      $region39: #{ac_discriminator_forward.1} parent=11 // pred_region
        _
      $region40: #{ac_discriminator_forward.1} parent=11 // pred_fallthru
        _
    $region12: #{ac_discriminator_forward.1} parent=5 // pred_fallthru
      _
    %p249 = scmp.lt.s32.totalorder %s14, 2
    // Predicated region
    $region41: #{ac_discriminator_forward.1} parent=5 // pred_check
      %p250 = pneg %p249
    $region42: #{ac_discriminator_forward.1} parent=5 // pred_check_branch
      %252 = sbr.rel (%p250) target = $region44
    $region43: #{ac_discriminator_forward.1} parent=5 // pred_region
      // Predicated region
      $region45: #{ac_discriminator_forward.1} parent=43 // pred_check
        %p253 = pneg %p34
      $region46: #{ac_discriminator_forward.1} parent=43 // pred_check_branch
        %255 = sbr.rel (%p253) target = $region48
      $region47: #{ac_discriminator_forward.1} parent=43 // pred_region
        %p256 = scmp.lt.s32.totalorder %s14, 1
        %s257 = scalar_select %p256, %s14, 1
        %s258 = smul.addr %s257, 3
        %s259 = smul.addr %s258, 4
        %s260 = scalar_lea.vmem %s0, %s259
      $region48: #{ac_discriminator_forward.1} parent=43 // pred_fallthru
        _
    $region44: #{ac_discriminator_forward.1} parent=5 // pred_fallthru
      _
    %p261 = scmp.le.s32.totalorder 1, %s14
    %p262 = scmp.lt.s32.totalorder %s14, 3
    %p263 = pnand %p261, %p262
    %p264 = pneg %p263
    // Predicated region
    $region49: #{ac_discriminator_forward.1} parent=5 // pred_check
      _
    $region50: #{ac_discriminator_forward.1} parent=5 // pred_check_branch
      %266 = sbr.rel (%p263) target = $region52
    $region51: #{ac_discriminator_forward.1} parent=5 // pred_region
      %s267 = ssub.s32 %s14, 1
      %p268 = scmp.lt.s32.totalorder %s19, 1
      %s269 = scalar_select %p268, %s19, 1
      %s270 = smul.addr %s269, 3
      %s271 = smul.addr %s270, 4
      %s272 = scalar_lea.vmem %s0, %s271
      %p273 = pneg %p40
      %p274 = pneg %p37
      %p275 = pneg %p61
      %p276 = pneg %p58
      %p277 = pneg %p82
      %p278 = pneg %p79
      %p279 = pneg %p103
      %p280 = pneg %p100
      %p281 = pneg %p124
      %p282 = pneg %p121
      %p283 = pneg %p145
      %p284 = pneg %p142
      %p285 = pneg %p166
      %p286 = pneg %p163
      %p287 = pneg %p187
      %p288 = pneg %p184
      %p289 = pneg %p213
      %p290 = pneg %p210
      %p291 = scmp.lt.s32.totalorder %s19, 1
      %s292 = scalar_select %p291, %s19, 1
      %s293 = smul.addr %s292, 2
      %s294 = smul.addr %s293, 8
      %s295 = scalar_lea.vmem %s8, %s294
      %p296 = scmp.lt.s32.totalorder %s19, 1
      %s297 = scalar_select %p296, %s19, 1
      %s298 = smul.addr %s297, 3
      %s299 = smul.addr %s298, 4
      %s300 = scalar_lea.vmem %s0, %s299
      %p301 = scmp.lt.s32.totalorder %s19, 1
      %s302 = scalar_select %p301, %s19, 1
      %s303 = smul.addr %s302, 2
      %s304 = smul.addr %s303, 8
      %s305 = scalar_lea.vmem %s8, %s304
      %vm307 = vcmask 154624
      %308 = vst.msk [vmem:[#allocation2] sm:$0xff] %vm307, 0.0
      %vm309 = vcmask 1047960
      %310 = vst.msk [vmem:[#allocation2 + $0x10] sm:$0xff] %vm309, 0.0
      %v311 = vld [vmem:[%s7] sm:$0x7]
      %v312 = vld [vmem:[%s1] sm:$0xf]
      %v313 = vld [vmem:[%s2] sm:$0xff]
      %v314 = vld [vmem:[%s3] sm:$0xf]
      %v315 = vld [vmem:[%s3 + $0x4] sm:$0xf]
      %v316 = vld [vmem:[%s4] sm:$0xff]
      %v317 = vld [vmem:[%s4 + $0x8] sm:$0xff]
      %v318 = vld [vmem:[%s5] sm:$0xff]
      %v319 = vld [vmem:[%s5 + $0x8] sm:$0x1]
      %v320 = vld [vmem:[%s6] sm:$0xff]
      %v321 = vld [vmem:[%s6 + $0x8] sm:$0x1]
      %v322 = vld [vmem:[%s300] sm:$0xff]
      %v323 = vld [vmem:[%s300 + $0x8] sm:$0xf]
      %v326 = vcombine.high %v322, %v322
      %v328 = vcombine.low %v322, %v322
      %v329 = vcombine.low %v323, %v323
      %330 = vrot.lane.b32.xlu0 %v328, 127
      %v331 = vpop.permute.xlu0 %330
      %332 = vrot.lane.b32.xlu0 %v322, 127
      %v333 = vpop.permute.xlu0 %332
      %334 = vrot.lane.b32.xlu0 %v329, 127
      %v335 = vpop.permute.xlu0 %334
      %vm336 = vcmask 1039360
      %v337 = vsel %vm336, %v331, %v333
      %v338 = vsel %vm336, %v333, %v335
      %342 = vrot.lane.b32.xlu0 %v322, 126
      %v343 = vpop.permute.xlu0 %342
      %344 = vrot.lane.b32.xlu0 %v326, 126
      %v345 = vpop.permute.xlu0 %344
      %346 = vrot.lane.b32.xlu0 %v323, 126
      %v347 = vpop.permute.xlu0 %346
      %vm348 = vcmask 1031168
      %v349 = vsel %vm348, %v343, %v345
      %v350 = vsel %vm348, %v345, %v347
      %354 = vrot.lane.b32.xlu0 %v328, 110
      %v355 = vpop.permute.xlu0 %354
      %356 = vrot.lane.b32.xlu0 %v322, 110
      %v357 = vpop.permute.xlu0 %356
      %358 = vrot.lane.b32.xlu0 %v329, 110
      %v359 = vpop.permute.xlu0 %358
      %vm360 = vcmask 900096
      %v361 = vsel %vm360, %v355, %v357
      %v362 = vsel %vm360, %v357, %v359
      %366 = vrot.lane.b32.xlu0 %v322, 109
      %v367 = vpop.permute.xlu0 %366
      %368 = vrot.lane.b32.xlu0 %v326, 109
      %v369 = vpop.permute.xlu0 %368
      %370 = vrot.lane.b32.xlu0 %v323, 109
      %v371 = vpop.permute.xlu0 %370
      %vm372 = vcmask 891904
      %v373 = vsel %vm372, %v367, %v369
      %v374 = vsel %vm372, %v369, %v371
      %378 = vrot.lane.b32.xlu0 %v328, 108
      %v379 = vpop.permute.xlu0 %378
      %380 = vrot.lane.b32.xlu0 %v322, 108
      %v381 = vpop.permute.xlu0 %380
      %382 = vrot.lane.b32.xlu0 %v329, 108
      %v383 = vpop.permute.xlu0 %382
      %vm384 = vcmask 883712
      %v385 = vsel %vm384, %v379, %v381
      %v386 = vsel %vm384, %v381, %v383
      %390 = vrot.lane.b32.xlu0 %v322, 92
      %v391 = vpop.permute.xlu0 %390
      %392 = vrot.lane.b32.xlu0 %v326, 92
      %v393 = vpop.permute.xlu0 %392
      %394 = vrot.lane.b32.xlu0 %v323, 92
      %v395 = vpop.permute.xlu0 %394
      %vm396 = vcmask 752640
      %v397 = vsel %vm396, %v391, %v393
      %v398 = vsel %vm396, %v393, %v395
      %402 = vrot.lane.b32.xlu0 %v328, 91
      %v403 = vpop.permute.xlu0 %402
      %404 = vrot.lane.b32.xlu0 %v322, 91
      %v405 = vpop.permute.xlu0 %404
      %406 = vrot.lane.b32.xlu0 %v329, 91
      %v407 = vpop.permute.xlu0 %406
      %vm408 = vcmask 744448
      %v409 = vsel %vm408, %v403, %v405
      %v410 = vsel %vm408, %v405, %v407
      %414 = vrot.lane.b32.xlu0 %v322, 90
      %v415 = vpop.permute.xlu0 %414
      %416 = vrot.lane.b32.xlu0 %v326, 90
      %v417 = vpop.permute.xlu0 %416
      %418 = vrot.lane.b32.xlu0 %v323, 90
      %v419 = vpop.permute.xlu0 %418
      %vm420 = vcmask 736256
      %v421 = vsel %vm420, %v415, %v417
      %v422 = vsel %vm420, %v417, %v419
      %vm426 = vcmask 1043456
      %v427 = vsel %vm426, %v322, %v337
      %v428 = vsel %vm426, %v326, %v338
      %v429 = vsel %vm426, %v323, %v335
      %v430 = vsel %vm426, %v349, %v361
      %v431 = vsel %vm426, %v350, %v362
      %v432 = vsel %vm426, %v347, %v359
      %v433 = vsel %vm426, %v373, %v385
      %v434 = vsel %vm426, %v374, %v386
      %v435 = vsel %vm426, %v371, %v383
      %v436 = vsel %vm426, %v397, %v409
      %v437 = vsel %vm426, %v398, %v410
      %v438 = vsel %vm426, %v395, %v407
      %v439 = vpack.c.bf16 %v430, %v427
      %v440 = vpack.c.bf16 %v431, %v428
      %v441 = vpack.c.bf16 %v432, %v429
      %v442 = vpack.c.bf16 %v436, %v433
      %v443 = vpack.c.bf16 %v437, %v434
      %v444 = vpack.c.bf16 %v438, %v435
      %v445 = vpack.c.bf16 %v421, %v421
      %v446 = vpack.c.bf16 %v422, %v422
      %v447 = vpack.c.bf16 %v419, %v419
      %449 = vset.pattern.permute.xlu0 0
      %450 = vperm.xlu0 %449, %v313
      %v451 = vpop.permute.xlu0 %450
      %vm453 = vcmask 293888
      %v455 = vsel %vm453, %v312, 0
      %vm457 = vcmask 1041408
      %v459 = vsel %vm457, %v445, 0
      %v462 = vsel %vm457, %v446, 0
      %v465 = vsel %vm457, %v447, 0
      %467 = vmatprep.subr.bf16.mxu0 %v440
      %468 = vmatpush1.bf16.msra.mxu0 %v439
      %469 = vmatprep.subr.bf16.mxu0 %v443
      %470 = vmatpush1.bf16.msra.mxu0 %v442
      %471 = vmatprep.subr.bf16.mxu0 %v462
      %472 = vmatpush1.bf16.msra.mxu0 %v459
      %473 = vmatprep.subr.bf16.mxu0 0
      %474 = vmatpush1.bf16.msra.mxu0 0
      %475 = vmatprep.subr.bf16.mxu0 0
      %476 = vmatpush1.bf16.msra.mxu0 0
      %477 = vmatprep.subr.bf16.mxu0 0
      %478 = vmatpush1.bf16.msra.mxu0 0
      %479 = vmatprep.subr.bf16.mxu0 0
      %480 = vmatpush1.bf16.msra.mxu0 0
      %481 = vmatprep.subr.bf16.mxu0 0
      %482 = vmatpush1.bf16.msra.mxu0 0
      %483 = vmatprep.subr.bf16.mxu0 0
      %484 = vmatpush1.bf16.msra.mxu0 0
      %485 = vmatprep.subr.bf16.mxu0 0
      %486 = vmatpush1.bf16.msra.mxu0 0
      %487 = vmatprep.subr.bf16.mxu0 0
      %488 = vmatpush1.bf16.msra.mxu0 0
      %489 = vmatprep.subr.bf16.mxu0 0
      %490 = vmatpush1.bf16.msra.mxu0 0
      %491 = vmatprep.subr.bf16.mxu0 0
      %492 = vmatpush1.bf16.msra.mxu0 0
      %493 = vmatprep.subr.bf16.mxu0 0
      %494 = vmatpush1.bf16.msra.mxu0 0
      %495 = vmatprep.subr.bf16.mxu0 0
      %496 = vmatpush1.bf16.msra.mxu0 0
      %497 = vmatprep.subr.bf16.mxu0 0
      %498 = vmatpush1.bf16.msra.mxu0 0
      %499 = vmatprep.mubr.bf16.mxu0 0
      %500 = vmatmul.mubr.bf16.gmra.mrb[0].mxu0 %v455
      %v501 = vpop.f32.mrb[0].mxu0
      %v502 = vadd.f32 %v451, %v501
      %v503 = vpop.f32.mrb[0].mxu0
      %v504 = vadd.f32 %v451, %v503
      %v505 = vpop.f32.mrb[0].mxu0
      %v506 = vpop.f32.mrb[0].mxu0
      %507 = vdwg.mxu0
      %508 = vmatprep.subr.bf16.mxu0 0
      %509 = vmatpush1.bf16.msra.mxu0 %v441
      %510 = vmatprep.subr.bf16.mxu0 0
      %511 = vmatpush1.bf16.msra.mxu0 %v444
      %512 = vmatprep.subr.bf16.mxu0 0
      %513 = vmatpush1.bf16.msra.mxu0 %v465
      %514 = vmatprep.subr.bf16.mxu0 0
      %515 = vmatpush1.bf16.msra.mxu0 0
      %516 = vmatprep.subr.bf16.mxu0 0
      %517 = vmatpush1.bf16.msra.mxu0 0
      %518 = vmatprep.subr.bf16.mxu0 0
      %519 = vmatpush1.bf16.msra.mxu0 0
      %520 = vmatprep.subr.bf16.mxu0 0
      %521 = vmatpush1.bf16.msra.mxu0 0
      %522 = vmatprep.subr.bf16.mxu0 0
      %523 = vmatpush1.bf16.msra.mxu0 0
      %524 = vmatprep.subr.bf16.mxu0 0
      %525 = vmatpush1.bf16.msra.mxu0 0
      %526 = vmatprep.subr.bf16.mxu0 0
      %527 = vmatpush1.bf16.msra.mxu0 0
      %528 = vmatprep.subr.bf16.mxu0 0
      %529 = vmatpush1.bf16.msra.mxu0 0
      %530 = vmatprep.subr.bf16.mxu0 0
      %531 = vmatpush1.bf16.msra.mxu0 0
      %532 = vmatprep.subr.bf16.mxu0 0
      %533 = vmatpush1.bf16.msra.mxu0 0
      %534 = vmatprep.subr.bf16.mxu0 0
      %535 = vmatpush1.bf16.msra.mxu0 0
      %536 = vmatprep.subr.bf16.mxu0 0
      %537 = vmatpush1.bf16.msra.mxu0 0
      %538 = vmatprep.subr.bf16.mxu0 0
      %539 = vmatpush1.bf16.msra.mxu0 0
      %540 = vmatprep.mubr.bf16.mxu0 0
      %541 = vmatmul.mubr.bf16.gmra.mrb[0].mxu0 %v455
      %v542 = vpop.f32.mrb[0].mxu0
      %v543 = vadd.f32 %v451, %v542
      %v544 = vpop.f32.mrb[0].mxu0
      %v545 = vpop.f32.mrb[0].mxu0
      %v546 = vpop.f32.mrb[0].mxu0
      %547 = vdwg.mxu0
      %v548 = vmax.f32 %v502, 0.0
      %v549 = vmax.f32 %v504, 0.0
      %v550 = vmax.f32 %v543, 0.0
      %v552 = vlaneseq
      %v553 = vshrl.u32 %v552, 7
      %v554 = vsub.s32 0, %v553
      %v555 = vrot.slane %v311, %v554
      %v556 = vlaneseq
      %v557 = vshrl.u32 %v556, 7
      %v558 = vsub.s32 1, %v557
      %v559 = vrot.slane %v311, %v558
      %v560 = vlaneseq
      %v561 = vshrl.u32 %v560, 7
      %v562 = vsub.s32 2, %v561
      %v563 = vrot.slane %v311, %v562
      %v567 = vmul.f32 %v548, %v555
      %v568 = vmul.f32 %v549, %v559
      %v569 = vmul.f32 %v550, %v563
      %573 = vrot.lane.b32.xlu0 %v567, 19
      %v574 = vpop.permute.xlu0 %573
      %575 = vrot.lane.b32.xlu0 %v568, 19
      %v576 = vpop.permute.xlu0 %575
      %577 = vrot.lane.b32.xlu0 %v569, 19
      %v578 = vpop.permute.xlu0 %577
      %v579 = vsel %vm307, %v574, %v576
      %v580 = vsel %vm307, %v576, %v578
      %vm584 = vcmask 1047704
      %585 = vst.msk [vmem:[#allocation2] sm:$0xff] %vm584, %v574
      %586 = vst [vmem:[#allocation2 + $0x8] sm:$0xff] %v579
      %vm587 = vcmask 416768
      %588 = vst.msk [vmem:[#allocation2 + $0x10] sm:$0xff] %vm587, %v580
      %v589 = vld [vmem:[#allocation2] sm:$0xff]
      %v590 = vld [vmem:[#allocation2 + $0x8] sm:$0xff]
      %v591 = vld [vmem:[#allocation2 + $0x10] sm:$0xff]
      %595 = vrot.lane.b32.xlu0 %v589, 127
      %v596 = vpop.permute.xlu0 %595
      %597 = vrot.lane.b32.xlu0 %v590, 127
      %v598 = vpop.permute.xlu0 %597
      %599 = vrot.lane.b32.xlu0 %v591, 127
      %v600 = vpop.permute.xlu0 %599
      %v601 = vsel %vm336, %v596, %v598
      %v602 = vsel %vm336, %v598, %v600
      %606 = vrot.lane.b32.xlu0 %v589, 126
      %v607 = vpop.permute.xlu0 %606
      %608 = vrot.lane.b32.xlu0 %v590, 126
      %v609 = vpop.permute.xlu0 %608
      %610 = vrot.lane.b32.xlu0 %v591, 126
      %v611 = vpop.permute.xlu0 %610
      %v612 = vsel %vm348, %v607, %v609
      %v613 = vsel %vm348, %v609, %v611
      %617 = vrot.lane.b32.xlu0 %v589, 110
      %v618 = vpop.permute.xlu0 %617
      %619 = vrot.lane.b32.xlu0 %v590, 110
      %v620 = vpop.permute.xlu0 %619
      %621 = vrot.lane.b32.xlu0 %v591, 110
      %v622 = vpop.permute.xlu0 %621
      %v623 = vsel %vm360, %v618, %v620
      %v624 = vsel %vm360, %v620, %v622
      %628 = vrot.lane.b32.xlu0 %v589, 109
      %v629 = vpop.permute.xlu0 %628
      %630 = vrot.lane.b32.xlu0 %v590, 109
      %v631 = vpop.permute.xlu0 %630
      %632 = vrot.lane.b32.xlu0 %v591, 109
      %v633 = vpop.permute.xlu0 %632
      %v634 = vsel %vm372, %v629, %v631
      %v635 = vsel %vm372, %v631, %v633
      %639 = vrot.lane.b32.xlu0 %v589, 108
      %v640 = vpop.permute.xlu0 %639
      %641 = vrot.lane.b32.xlu0 %v590, 108
      %v642 = vpop.permute.xlu0 %641
      %643 = vrot.lane.b32.xlu0 %v591, 108
      %v644 = vpop.permute.xlu0 %643
      %v645 = vsel %vm384, %v640, %v642
      %v646 = vsel %vm384, %v642, %v644
      %650 = vrot.lane.b32.xlu0 %v589, 92
      %v651 = vpop.permute.xlu0 %650
      %652 = vrot.lane.b32.xlu0 %v590, 92
      %v653 = vpop.permute.xlu0 %652
      %654 = vrot.lane.b32.xlu0 %v591, 92
      %v655 = vpop.permute.xlu0 %654
      %v656 = vsel %vm396, %v651, %v653
      %v657 = vsel %vm396, %v653, %v655
      %661 = vrot.lane.b32.xlu0 %v589, 91
      %v662 = vpop.permute.xlu0 %661
      %663 = vrot.lane.b32.xlu0 %v590, 91
      %v664 = vpop.permute.xlu0 %663
      %665 = vrot.lane.b32.xlu0 %v591, 91
      %v666 = vpop.permute.xlu0 %665
      %v667 = vsel %vm408, %v662, %v664
      %v668 = vsel %vm408, %v664, %v666
      %672 = vrot.lane.b32.xlu0 %v589, 90
      %v673 = vpop.permute.xlu0 %672
      %674 = vrot.lane.b32.xlu0 %v590, 90
      %v675 = vpop.permute.xlu0 %674
      %676 = vrot.lane.b32.xlu0 %v591, 90
      %v677 = vpop.permute.xlu0 %676
      %v678 = vsel %vm420, %v673, %v675
      %v679 = vsel %vm420, %v675, %v677
      %v683 = vpack.c.bf16 %v601, %v589
      %v684 = vpack.c.bf16 %v602, %v590
      %v685 = vpack.c.bf16 %v600, %v591
      %v686 = vpack.c.bf16 %v623, %v612
      %v687 = vpack.c.bf16 %v624, %v613
      %v688 = vpack.c.bf16 %v622, %v611
      %v689 = vpack.c.bf16 %v645, %v634
      %v690 = vpack.c.bf16 %v646, %v635
      %v691 = vpack.c.bf16 %v644, %v633
      %v692 = vpack.c.bf16 %v667, %v656
      %v693 = vpack.c.bf16 %v668, %v657
      %v694 = vpack.c.bf16 %v666, %v655
      %v695 = vpack.c.bf16 %v678, %v678
      %v696 = vpack.c.bf16 %v679, %v679
      %v697 = vpack.c.bf16 %v677, %v677
      %699 = vset.pattern.permute.xlu0 0
      %700 = vperm.xlu0 %699, %v316
      %v701 = vpop.permute.xlu0 %700
      %704 = vset.pattern.permute.xlu0 0
      %705 = vperm.xlu0 %704, %v317
      %v706 = vpop.permute.xlu0 %705
      %v710 = vunpack.c.l.b16 %v314
      %v711 = vunpack.c.l.b16 %v315
      %v712 = vpack.c.b16 %v711, %v710
      %vm713 = vcmask 588800
      %v715 = vsel %vm713, %v712, 0
      %v718 = vsel %vm426, %v695, 0
      %v721 = vsel %vm426, %v696, 0
      %v724 = vsel %vm426, %v697, 0
      %726 = vmatprep.subr.bf16.mxu0 %v684
      %727 = vmatpush1.bf16.msra.mxu0 %v683
      %728 = vmatprep.subr.bf16.mxu0 %v687
      %729 = vmatpush1.bf16.msra.mxu0 %v686
      %730 = vmatprep.subr.bf16.mxu0 %v690
      %731 = vmatpush1.bf16.msra.mxu0 %v689
      %732 = vmatprep.subr.bf16.mxu0 %v693
      %733 = vmatpush1.bf16.msra.mxu0 %v692
      %734 = vmatprep.subr.bf16.mxu0 %v721
      %735 = vmatpush1.bf16.msra.mxu0 %v718
      %736 = vmatprep.subr.bf16.mxu0 0
      %737 = vmatpush1.bf16.msra.mxu0 0
      %738 = vmatprep.subr.bf16.mxu0 0
      %739 = vmatpush1.bf16.msra.mxu0 0
      %740 = vmatprep.subr.bf16.mxu0 0
      %741 = vmatpush1.bf16.msra.mxu0 0
      %742 = vmatprep.subr.bf16.mxu0 0
      %743 = vmatpush1.bf16.msra.mxu0 0
      %744 = vmatprep.subr.bf16.mxu0 0
      %745 = vmatpush1.bf16.msra.mxu0 0
      %746 = vmatprep.subr.bf16.mxu0 0
      %747 = vmatpush1.bf16.msra.mxu0 0
      %748 = vmatprep.subr.bf16.mxu0 0
      %749 = vmatpush1.bf16.msra.mxu0 0
      %750 = vmatprep.subr.bf16.mxu0 0
      %751 = vmatpush1.bf16.msra.mxu0 0
      %752 = vmatprep.subr.bf16.mxu0 0
      %753 = vmatpush1.bf16.msra.mxu0 0
      %754 = vmatprep.subr.bf16.mxu0 0
      %755 = vmatpush1.bf16.msra.mxu0 0
      %756 = vmatprep.subr.bf16.mxu0 0
      %757 = vmatpush1.bf16.msra.mxu0 0
      %758 = vmatprep.mubr.bf16.mxu0 0
      %759 = vmatmul.mubr.bf16.gmra.mrb[0].mxu0 %v715
      %v760 = vpop.f32.mrb[0].mxu0
      %v761 = vadd.f32 %v701, %v760
      %v762 = vpop.f32.mrb[0].mxu0
      %v763 = vadd.f32 %v701, %v762
      %v764 = vpop.f32.mrb[0].mxu0
      %v765 = vadd.f32 %v706, %v764
      %v766 = vpop.f32.mrb[0].mxu0
      %v767 = vadd.f32 %v706, %v766
      %768 = vdwg.mxu0
      %769 = vmatprep.subr.bf16.mxu0 0
      %770 = vmatpush1.bf16.msra.mxu0 %v685
      %771 = vmatprep.subr.bf16.mxu0 0
      %772 = vmatpush1.bf16.msra.mxu0 %v688
      %773 = vmatprep.subr.bf16.mxu0 0
      %774 = vmatpush1.bf16.msra.mxu0 %v691
      %775 = vmatprep.subr.bf16.mxu0 0
      %776 = vmatpush1.bf16.msra.mxu0 %v694
      %777 = vmatprep.subr.bf16.mxu0 0
      %778 = vmatpush1.bf16.msra.mxu0 %v724
      %779 = vmatprep.subr.bf16.mxu0 0
      %780 = vmatpush1.bf16.msra.mxu0 0
      %781 = vmatprep.subr.bf16.mxu0 0
      %782 = vmatpush1.bf16.msra.mxu0 0
      %783 = vmatprep.subr.bf16.mxu0 0
      %784 = vmatpush1.bf16.msra.mxu0 0
      %785 = vmatprep.subr.bf16.mxu0 0
      %786 = vmatpush1.bf16.msra.mxu0 0
      %787 = vmatprep.subr.bf16.mxu0 0
      %788 = vmatpush1.bf16.msra.mxu0 0
      %789 = vmatprep.subr.bf16.mxu0 0
      %790 = vmatpush1.bf16.msra.mxu0 0
      %791 = vmatprep.subr.bf16.mxu0 0
      %792 = vmatpush1.bf16.msra.mxu0 0
      %793 = vmatprep.subr.bf16.mxu0 0
      %794 = vmatpush1.bf16.msra.mxu0 0
      %795 = vmatprep.subr.bf16.mxu0 0
      %796 = vmatpush1.bf16.msra.mxu0 0
      %797 = vmatprep.subr.bf16.mxu0 0
      %798 = vmatpush1.bf16.msra.mxu0 0
      %799 = vmatprep.subr.bf16.mxu0 0
      %800 = vmatpush1.bf16.msra.mxu0 0
      %801 = vmatprep.mubr.bf16.mxu0 0
      %802 = vmatmul.mubr.bf16.gmra.mrb[0].mxu0 %v715
      %v803 = vpop.f32.mrb[0].mxu0
      %v804 = vadd.f32 %v701, %v803
      %v805 = vpop.f32.mrb[0].mxu0
      %v806 = vpop.f32.mrb[0].mxu0
      %v807 = vadd.f32 %v706, %v806
      %v808 = vpop.f32.mrb[0].mxu0
      %809 = vdwg.mxu0
      %v810 = vmax.f32 %v761, 0.0
      %v811 = vmax.f32 %v763, 0.0
      %v812 = vmax.f32 %v804, 0.0
      %v813 = vmax.f32 %v765, 0.0
      %v814 = vmax.f32 %v767, 0.0
      %v815 = vmax.f32 %v807, 0.0
      %v816 = vmul.f32 %v810, %v555
      %v817 = vmul.f32 %v811, %v559
      %v818 = vmul.f32 %v812, %v563
      %v819 = vmul.f32 %v813, %v555
      %v820 = vmul.f32 %v814, %v559
      %v821 = vmul.f32 %v815, %v563
      %v822 = vadd.f32 %v816, %v817
      %vm823 = vcmask 261120
      %v824 = vsel %vm823, %v818, 0.0
      %v825 = vadd.f32 %v822, %v824
      %826 = vadd.xlane.f32.xlu0 %v825
      %v827 = vpop.xlane.xlu0 %826
      %v828 = vadd.f32 %v819, %v820
      %v829 = vsel %vm823, %v821, 0.0
      %v830 = vadd.f32 %v828, %v829
      %831 = vadd.xlane.f32.xlu0 %v830
      %v832 = vpop.xlane.xlu0 %831
      %vm833 = vcmask 130048
      %v835 = vsel %vm833, %v318, 0
      %v838 = vsel %vm833, %v319, 0
      %840 = vmatprep.subr.mxu0 0.0
      %841 = vmatpush1.msra.mxu0 %v827
      %842 = vmatprep.subr.mxu0 0.0
      %843 = vmatpush1.msra.mxu0 %v832
      %844 = vmatprep.subr.mxu0 0.0
      %845 = vmatpush1.msra.mxu0 0.0
      %846 = vmatprep.subr.mxu0 0.0
      %847 = vmatpush1.msra.mxu0 0.0
      %848 = vmatprep.subr.mxu0 0.0
      %849 = vmatpush1.msra.mxu0 0.0
      %850 = vmatprep.subr.mxu0 0.0
      %851 = vmatpush1.msra.mxu0 0.0
      %852 = vmatprep.subr.mxu0 0.0
      %853 = vmatpush1.msra.mxu0 0.0
      %854 = vmatprep.subr.mxu0 0.0
      %855 = vmatpush1.msra.mxu0 0.0
      %856 = vmatprep.subr.mxu0 0.0
      %857 = vmatpush1.msra.mxu0 0.0
      %858 = vmatprep.subr.mxu0 0.0
      %859 = vmatpush1.msra.mxu0 0.0
      %860 = vmatprep.subr.mxu0 0.0
      %861 = vmatpush1.msra.mxu0 0.0
      %862 = vmatprep.subr.mxu0 0.0
      %863 = vmatpush1.msra.mxu0 0.0
      %864 = vmatprep.subr.mxu0 0.0
      %865 = vmatpush1.msra.mxu0 0.0
      %866 = vmatprep.subr.mxu0 0.0
      %867 = vmatpush1.msra.mxu0 0.0
      %868 = vmatprep.subr.mxu0 0.0
      %869 = vmatpush1.msra.mxu0 0.0
      %870 = vmatprep.subr.mxu0 0.0
      %871 = vmatpush1.msra.mxu0 0.0
      %872 = vmatprep.subr.mxu0 0.0
      %873 = vmatpush1.msra.mxu0 0.0
      %874 = vmatprep.subr.mxu0 0.0
      %875 = vmatpush1.msra.mxu0 0.0
      %876 = vmatprep.subr.mxu0 0.0
      %877 = vmatpush1.msra.mxu0 0.0
      %878 = vmatprep.subr.mxu0 0.0
      %879 = vmatpush1.msra.mxu0 0.0
      %880 = vmatprep.subr.mxu0 0.0
      %881 = vmatpush1.msra.mxu0 0.0
      %882 = vmatprep.subr.mxu0 0.0
      %883 = vmatpush1.msra.mxu0 0.0
      %884 = vmatprep.subr.mxu0 0.0
      %885 = vmatpush1.msra.mxu0 0.0
      %886 = vmatprep.subr.mxu0 0.0
      %887 = vmatpush1.msra.mxu0 0.0
      %888 = vmatprep.subr.mxu0 0.0
      %889 = vmatpush1.msra.mxu0 0.0
      %890 = vmatprep.subr.mxu0 0.0
      %891 = vmatpush1.msra.mxu0 0.0
      %892 = vmatprep.subr.mxu0 0.0
      %893 = vmatpush1.msra.mxu0 0.0
      %894 = vmatprep.subr.mxu0 0.0
      %895 = vmatpush1.msra.mxu0 0.0
      %896 = vmatprep.subr.mxu0 0.0
      %897 = vmatpush1.msra.mxu0 0.0
      %898 = vmatprep.subr.mxu0 0.0
      %899 = vmatpush1.msra.mxu0 0.0
      %900 = vmatprep.subr.mxu0 0.0
      %901 = vmatpush1.msra.mxu0 0.0
      %902 = vmatprep.subr.mxu0 0.0
      %903 = vmatpush1.msra.mxu0 0.0
      %904 = vmatprep.mubr.f32.mxu0 0.0
      %905 = vmatmul.mubr.f32.gmra.mrb[0].mxu0 %v835
      %v906 = vpop.f32.mrb[0].mxu0
      %v907 = vadd.f32 %v320, %v906
      %v908 = vpop.f32.mrb[0].mxu0
      %909 = vmatprep.mubr.f32.mxu0 0.0
      %910 = vmatmul.mubr.f32.gmra.mrb[0].mxu0 %v838
      %v911 = vpop.f32.mrb[0].mxu0
      %v912 = vadd.f32 %v321, %v911
      %v913 = vpop.f32.mrb[0].mxu0
      %914 = vdwg.mxu0
      %vm915 = vcmask 7168
      %916 = vst.msk [vmem:[%s305] sm:$0xff] %vm915, %v907
      %vm917 = vcmask 0
      %918 = vst.msk [vmem:[%s305 + $0x8] sm:$0x1] %vm917, %v912
      %p919 = scmp.lt.s32.totalorder %s19, 1
      %s920 = scalar_select %p919, %s19, 1
      %s921 = smul.addr %s920, 2
      %s922 = smul.addr %s921, 8
      %s923 = scalar_lea.vmem %s8, %s922
      // Predicated region
      $region53: #{ac_discriminator_forward.1} parent=51 // pred_check
        %p924 = pneg %p210
      $region54: #{ac_discriminator_forward.1} parent=51 // pred_check_branch
        %926 = sbr.rel (%p924) target = $region56
      $region55: #{ac_discriminator_forward.1} parent=51 // pred_region
        _
      $region56: #{ac_discriminator_forward.1} parent=51 // pred_fallthru
        _
    $region52: #{ac_discriminator_forward.1} parent=5 // pred_fallthru
      _
    %p927 = scmp.le.s32.totalorder 2, %s14
    // Predicated region
    $region57: #{ac_discriminator_forward.1} parent=5 // pred_check
      %p928 = pneg %p927
    $region58: #{ac_discriminator_forward.1} parent=5 // pred_check_branch
      %930 = sbr.rel (%p928) target = $region60
    $region59: #{ac_discriminator_forward.1} parent=5 // pred_region
      %s931 = ssub.s32 %s14, 2
      // Predicated region
      $region61: #{ac_discriminator_forward.1} parent=59 // pred_check
        %p932 = pneg %p216
      $region62: #{ac_discriminator_forward.1} parent=59 // pred_check_branch
        %934 = sbr.rel (%p932) target = $region64
      $region63: #{ac_discriminator_forward.1} parent=59 // pred_region
        %p935 = scmp.lt.s32.totalorder %s20, 1
        %s936 = scalar_select %p935, %s20, 1
        %s937 = smul.addr %s936, 2
        %s938 = smul.addr %s937, 8
        %s939 = scalar_lea.vmem %s8, %s938
      $region64: #{ac_discriminator_forward.1} parent=59 // pred_fallthru
        _
    $region60: #{ac_discriminator_forward.1} parent=5 // pred_fallthru
      _
  $region6: #{ac_discriminator_forward.1} parent=0 // loop_footer
    %s18 = sadd.s32 1, %s14
  $region7: #{ac_discriminator_forward.1} parent=0 // loop_footer_branch
    %13 = sbr.rel target = $region3
  $region8: #{ac_discriminator_forward.1} parent=0 // loop_exit
    _

</llo_original>
